<compile_context>
chip_gen: v6e
topology: v6e:2x2x1
jax: 0.10.0
libtpu: 0.0.40
codegen_flags: <defaults>
</compile_context>

<pallas_src>
import functools

import jax
import jax.numpy as jnp
import numpy as np
from jax.experimental import pallas as pl
from jax.experimental.pallas import tpu as pltpu

EPS = 1e-5      # PyTorch BatchNorm2d default
LANES = 128


def _round_up(x, m):
    return (x + m - 1) // m * m


# ------------------------------ Pallas kernel -------------------------------

def _bottleneck_kernel(x_ref, w1_ref, b1_ref, w2_ref, b2_ref, mask_ref,
                       o_ref, h1_scr, *, taps1, taps2, wp2, m):
    """Fused lv1 -> lv2(+shortcut+residual) block; h1 lives in VMEM scratch.

    x_ref   : (B, P, Cin, Lpad1) bf16  phase-decomposed, flattened, padded input
    w1_ref  : (Cout, 9*Cin)      bf16  lv1 weights, taps stacked along K (BN1 folded)
    b1_ref  : (Cout, 1)          f32   folded BN1 bias
    w2_ref  : (Cout, 9*Cout)     bf16  lv2 + 1x1-shortcut + BN fused weights
    b2_ref  : (Cout, 1)          f32   folded lv2/shortcut bias
    mask_ref: (1, M)             f32   1.0 on valid h1 columns, 0.0 on halo/garbage
    o_ref   : (B, Cout, M)             lane-dense output (spatial on lanes)
    h1_scr  : (Cout, L2pad)      bf16  h1 in the zero-haloed flat lv2 layout
    """
    # Re-zero the scratch every grid step so the lv2 halo never leaks the
    # previous image's border (scratch persists across grid steps).
    h1_scr[...] = jnp.zeros_like(h1_scr)

    nb = o_ref.shape[0]
    for b in range(nb):                              # images per grid step
        # ---- lv1: gather all 9 tap slices into one (9*Cin, M) slab and do a
        #      single deep contraction on the MXU --------------------------
        x1 = jnp.concatenate(
            [x_ref[b, p, :, pl.ds(off, m)] for (p, off) in taps1], axis=0)
        h1 = jnp.dot(w1_ref[...], x1, preferred_element_type=jnp.float32)
        h1 = jnp.maximum(h1 + b1_ref[...], 0.0) * mask_ref[...]
        # Drop the (zero-masked) h1 into the lv2 flat layout with one
        # contiguous lane-offset store; masked columns become the exact-zero
        # left/right halo, everything outside the window stays zero.
        h1_scr[:, pl.ds(wp2 + 1, m)] = h1.astype(h1_scr.dtype)

        # ---- lv2 + folded 1x1 shortcut + residual + ReLU: one contraction --
        x2 = jnp.concatenate(
            [h1_scr[:, pl.ds(off, m)] for off in taps2], axis=0)
        h2 = jnp.dot(w2_ref[...], x2, preferred_element_type=jnp.float32)
        o_ref[b] = jnp.maximum(h2 + b2_ref[...], 0.0).astype(o_ref.dtype)


# ----------------------- host-side layout / BN folding ----------------------

def _prep_inputs(x_nchw, stride, dtype):
    """NCHW -> (N, stride^2, C, Lpad1) phase-decomposed flat layout.

    The phase-layout row width is forced to wp2 = Wo+2 (the padded lv2 row
    width) so the lv1 output flat index i*wp2 + j lines up 1:1 with the lv2
    input layout used by the in-kernel scratch.
    """
    n, c, h, w = x_nchw.shape
    ho = (h - 1) // stride + 1          # = (h + 2 - 3)//stride + 1
    wo = (w - 1) // stride + 1
    wp2 = wo + 2                        # padded h1 row width (lv2 layout)
    wps = wp2                           # lv1 phase-layout row width (== wp2)
    wp_in = wps * stride
    hp_in = _round_up(h + 2, stride)
    hps = hp_in // stride

    xp = jnp.pad(x_nchw,
                 ((0, 0), (0, 0), (1, hp_in - h - 1), (1, wp_in - w - 1)))
    # phases[n, pi, pj, c, a, b] = xp[n, c, a*stride + pi, b*stride + pj]
    xph = xp.reshape(n, c, hps, stride, wps, stride)
    xph = jnp.transpose(xph, (0, 3, 5, 1, 2, 4))
    xph = xph.reshape(n, stride * stride, c, hps * wps)

    taps1 = tuple(((ki % stride) * stride + (kj % stride),
                   (ki // stride) * wps + (kj // stride))
                  for ki in range(3) for kj in range(3))
    taps2 = tuple(ki * wp2 + kj for ki in range(3) for kj in range(3))

    m = _round_up(ho * wp2, LANES)                         # lane-dense width
    lpad1 = _round_up(max(max(o for _, o in taps1) + m, hps * wps), LANES)
    l2pad = _round_up(max(taps2) + m, LANES)
    xph = jnp.pad(xph, ((0, 0), (0, 0), (0, 0), (0, lpad1 - hps * wps)))
    return xph.astype(dtype), taps1, taps2, dict(
        ho=ho, wo=wo, wp2=wp2, m=m, lpad1=lpad1, l2pad=l2pad)


def _fold_bn(gamma, beta, mean, var):
    s = gamma / jnp.sqrt(var + EPS)
    return s, beta - mean * s


def _lv1_weights(w1, bn1, dtype):
    """conv1 with BN1 folded: (Cout, 9*Cin) tap-stacked weight + (Cout,1) bias."""
    s1, b1 = _fold_bn(*bn1)
    wf = w1 * s1[:, None, None, None]                      # (Cout, Cin, 3, 3)
    cout, cin = wf.shape[0], wf.shape[1]
    w_flat = jnp.transpose(wf, (0, 2, 3, 1)).reshape(cout, 9 * cin)
    return w_flat.astype(dtype), b1[:, None].astype(jnp.float32)


def _lv2_fused_weights(w2, bn2, wsc, bnsc, dtype):
    """Fuse conv2 + BN2 + 1x1 shortcut conv + BNsc + residual into ONE conv.

    h2  = sum_k (s2*W2_k) @ x_k + b2
    out = relu(h2 + ssc*Wsc @ h2 + bsc)
        = relu(sum_k [(I + ssc*Wsc)(s2*W2_k)] @ x_k + [(I + ssc*Wsc) b2 + bsc])
    """
    cout, cin = w2.shape[0], w2.shape[1]
    assert wsc.shape[1] == cout, "shortcut is applied to the lv2 output"
    s2, b2 = _fold_bn(*bn2)
    ssc, bsc = _fold_bn(*bnsc)
    a = jnp.eye(cout, dtype=jnp.float32) + ssc[:, None] * wsc[:, :, 0, 0]
    wf = jnp.einsum('od,dckl->ockl', a, w2 * s2[:, None, None, None])
    w_flat = jnp.transpose(wf, (0, 2, 3, 1)).reshape(cout, 9 * cin)
    bf = a @ b2 + bsc
    return w_flat.astype(dtype), bf[:, None].astype(jnp.float32)


# --------------------------------- forward ----------------------------------

def bottleneck33_forward(x_nchw, params, stride, *, compute_dtype=jnp.bfloat16):
    # NOTE: params assume the projection shortcut path (stride != 1), which is
    # the only configuration the PyTorch module's `x += self.sc(x)` supports
    # with in_planes == out_planes and stride != 1.
    (w1, bn1), (w2, bn2), (wsc, bnsc) = params
    n, cin, _, _ = x_nchw.shape
    cout = w1.shape[0]

    xph, taps1, taps2, d = _prep_inputs(x_nchw, stride, compute_dtype)
    ho, wo, wp2, m, lpad1, l2pad = (d["ho"], d["wo"], d["wp2"], d["m"],
                                    d["lpad1"], d["l2pad"])

    w1f, b1f = _lv1_weights(w1, bn1, compute_dtype)
    w2f, b2f = _lv2_fused_weights(w2, bn2, wsc, bnsc, compute_dtype)

    # Host-built validity mask: keep columns j<Wo of each wp2-wide row and
    # rows i<Ho; everything else (the lv2 halo) must be exactly zero.
    cols = np.arange(m)
    mask = jnp.asarray((((cols % wp2) < wo) & (cols < ho * wp2))
                       .astype(np.float32)[None, :])

    # Batch several images per grid step (amortizes fixed per-step pipeline
    # overhead) while keeping >= 2 steps so megacore parts can still split
    # the batch axis across TensorCores.
    block_n = 1
    for cand in (8, 4, 2):
        if n % cand == 0 and n // cand >= 2:
            block_n = cand
            break
    nsteps = n // block_n
    nph = stride * stride

    kernel = functools.partial(_bottleneck_kernel, taps1=taps1, taps2=taps2,
                               wp2=wp2, m=m)
    out_flat = pl.pallas_call(
        kernel,
        out_shape=jax.ShapeDtypeStruct((n, cout, m), jnp.float32),
        grid_spec=pltpu.PrefetchScalarGridSpec(
            num_scalar_prefetch=0,
            grid=(nsteps,),
            in_specs=[
                pl.BlockSpec((block_n, nph, cin, lpad1),
                             lambda i: (i, 0, 0, 0)),
                pl.BlockSpec((cout, 9 * cin), lambda i: (0, 0)),
                pl.BlockSpec((cout, 1), lambda i: (0, 0)),
                pl.BlockSpec((cout, 9 * cout), lambda i: (0, 0)),
                pl.BlockSpec((cout, 1), lambda i: (0, 0)),
                pl.BlockSpec((1, m), lambda i: (0, 0)),
            ],
            out_specs=pl.BlockSpec((block_n, cout, m), lambda i: (i, 0, 0)),
            scratch_shapes=[pltpu.VMEM((cout, l2pad), compute_dtype)],
        ),
        compiler_params=pltpu.CompilerParams(
            # TODO(synk): on v7x use pltpu.CORE_PARALLEL here to force a 2-TC
            # split; plain "parallel" is the safe portable default.
            dimension_semantics=("parallel",),
            vmem_limit_bytes=32 * 1024 * 1024),
    )(xph, w1f, b1f, w2f, b2f, mask)

    # TODO(synk): when chaining blocks, return `out_flat` (lane-dense flat
    # layout) directly and skip this unflatten + the next block's prep.
    return out_flat[:, :, :ho * wp2].reshape(n, cout, ho, wp2)[:, :, :, :wo]


# ----------------------------- pure-JAX reference ----------------------------

def _ref_forward(x, params, stride):
    (w1, bn1), (w2, bn2), (wsc, bnsc) = params

    def conv(v, w, s, pad):
        return jax.lax.conv_general_dilated(
            v, w, (s, s), ((pad, pad), (pad, pad)),
            dimension_numbers=("NCHW", "OIHW", "NCHW"))

    def bn(v, g, b, mu, var):
        sc = g / jnp.sqrt(var + EPS)
        return v * sc[None, :, None, None] + (b - mu * sc)[None, :, None, None]

    h1 = jax.nn.relu(bn(conv(x, w1, stride, 1), *bn1))
    h2 = bn(conv(h1, w2, 1, 1), *bn2)
    sc = bn(conv(h2, wsc, 1, 0), *bnsc)
    return jax.nn.relu(h2 + sc)


# ----------------------------------- main ------------------------------------

if __name__ == "__main__":
    N, Cin, H, W = 4, 8, 16, 16
    Cout = 8        # in_planes == out_planes so `x += self.sc(x)` type-checks
    stride = 2      # stride != 1 -> sc = Conv1x1 + BN

    key = jax.random.PRNGKey(0)
    ks = jax.random.split(key, 16)

    def bn_params(k0, k1, k2, k3, c):
        gamma = 1.0 + 0.1 * jax.random.normal(ks[k0], (c,), jnp.float32)
        beta = 0.1 * jax.random.normal(ks[k1], (c,), jnp.float32)
        mean = 0.1 * jax.random.normal(ks[k2], (c,), jnp.float32)
        var = jnp.abs(jax.random.normal(ks[k3], (c,), jnp.float32)) + 0.5
        return gamma, beta, mean, var

    w1 = 0.1 * jax.random.normal(ks[0], (Cout, Cin, 3, 3), jnp.float32)
    w2 = 0.1 * jax.random.normal(ks[1], (Cout, Cout, 3, 3), jnp.float32)
    wsc = 0.1 * jax.random.normal(ks[2], (Cout, Cout, 1, 1), jnp.float32)
    params = ((w1, bn_params(3, 4, 5, 6, Cout)),
              (w2, bn_params(7, 8, 9, 10, Cout)),
              (wsc, bn_params(11, 12, 13, 14, Cout)))

    x = jax.random.normal(ks[15], (N, Cin, H, W), jnp.float32)

    forward = jax.jit(bottleneck33_forward, static_argnums=(2,))
    out = jax.block_until_ready(forward(x, params, stride))
    ref = jax.block_until_ready(_ref_forward(x, params, stride))

    assert out.shape == ref.shape, (out.shape, ref.shape)
    # bf16 operands (f32 accumulation) -> relaxed tolerance vs the f32 reference
    np.testing.assert_allclose(np.asarray(out), np.asarray(ref),
                               rtol=3e-2, atol=3e-2)
    print("KERNEL_OK")
</pallas_src>

<mosaic_0001>
module attributes {stable_mosaic.version = 11 : i64} {
  func.func @_bottleneck_kernel(%arg0: i32, %arg1: memref<2x4x8x256xbf16, #tpu.memory_space<vmem>>, %arg2: memref<8x72xbf16, #tpu.memory_space<vmem>>, %arg3: memref<8x1xf32, #tpu.memory_space<vmem>>, %arg4: memref<8x72xbf16, #tpu.memory_space<vmem>>, %arg5: memref<8x1xf32, #tpu.memory_space<vmem>>, %arg6: memref<1x128xf32, #tpu.memory_space<vmem>>, %arg7: memref<2x8x128xf32, #tpu.memory_space<vmem>>, %arg8: memref<8x256xbf16, #tpu.memory_space<vmem>>) attributes {dimension_semantics = [#tpu.dimension_semantics<parallel>], iteration_bounds = array<i64: 2>, scalar_prefetch = 0 : i64, scratch_operands = 1 : i64, tpu.core_type = #tpu.core_type<tc>, window_params = [{transform_indices = @transform_0, window_bounds = array<i64: 2, 4, 8, 256>}, {pipeline_mode = #tpu.pipeline_mode<synchronous>, transform_indices = @transform_1, window_bounds = array<i64: 8, 72>}, {pipeline_mode = #tpu.pipeline_mode<synchronous>, transform_indices = @transform_2, window_bounds = array<i64: 8, 1>}, {pipeline_mode = #tpu.pipeline_mode<synchronous>, transform_indices = @transform_3, window_bounds = array<i64: 8, 72>}, {pipeline_mode = #tpu.pipeline_mode<synchronous>, transform_indices = @transform_4, window_bounds = array<i64: 8, 1>}, {pipeline_mode = #tpu.pipeline_mode<synchronous>, transform_indices = @transform_5, window_bounds = array<i64: 1, 128>}, {transform_indices = @transform_6, window_bounds = array<i64: 2, 8, 128>}]} {
    %cst = arith.constant 0.000000e+00 : bf16
    %0 = vector.broadcast %cst : bf16 to vector<8x256xbf16>
    %c0 = arith.constant 0 : index
    %c0_0 = arith.constant 0 : index
    %1 = vector.load %arg8[%c0, %c0_0] : memref<8x256xbf16, #tpu.memory_space<vmem>>, vector<8x256xbf16>
    tpu.vector_store %arg8[%c0, %c0_0], %0 {strides = array<i32>} : memref<8x256xbf16, #tpu.memory_space<vmem>>, vector<8x256xbf16>,
    %c0_1 = arith.constant 0 : index
    %c0_2 = arith.constant 0 : index
    %c0_3 = arith.constant 0 : index
    %c0_4 = arith.constant 0 : index
    %2 = vector.load %arg1[%c0_1, %c0_2, %c0_3, %c0_4] : memref<2x4x8x256xbf16, #tpu.memory_space<vmem>>, vector<1x1x8x128xbf16>
    %3 = vector.shape_cast %2 : vector<1x1x8x128xbf16> to vector<8x128xbf16>
    %c0_5 = arith.constant 0 : index
    %c1 = arith.constant 1 : index
    %c0_6 = arith.constant 0 : index
    %c0_7 = arith.constant 0 : index
    %4 = vector.load %arg1[%c0_5, %c1, %c0_6, %c0_7] : memref<2x4x8x256xbf16, #tpu.memory_space<vmem>>, vector<1x1x8x128xbf16>
    %5 = vector.shape_cast %4 : vector<1x1x8x128xbf16> to vector<8x128xbf16>
    %c0_8 = arith.constant 0 : index
    %c0_9 = arith.constant 0 : index
    %c0_10 = arith.constant 0 : index
    %c1_11 = arith.constant 1 : index
    %6 = vector.load %arg1[%c0_8, %c0_9, %c0_10, %c1_11] : memref<2x4x8x256xbf16, #tpu.memory_space<vmem>>, vector<1x1x8x128xbf16>
    %7 = vector.shape_cast %6 : vector<1x1x8x128xbf16> to vector<8x128xbf16>
    %c0_12 = arith.constant 0 : index
    %c2 = arith.constant 2 : index
    %c0_13 = arith.constant 0 : index
    %c0_14 = arith.constant 0 : index
    %8 = vector.load %arg1[%c0_12, %c2, %c0_13, %c0_14] : memref<2x4x8x256xbf16, #tpu.memory_space<vmem>>, vector<1x1x8x128xbf16>
    %9 = vector.shape_cast %8 : vector<1x1x8x128xbf16> to vector<8x128xbf16>
    %c0_15 = arith.constant 0 : index
    %c3 = arith.constant 3 : index
    %c0_16 = arith.constant 0 : index
    %c0_17 = arith.constant 0 : index
    %10 = vector.load %arg1[%c0_15, %c3, %c0_16, %c0_17] : memref<2x4x8x256xbf16, #tpu.memory_space<vmem>>, vector<1x1x8x128xbf16>
    %11 = vector.shape_cast %10 : vector<1x1x8x128xbf16> to vector<8x128xbf16>
    %c0_18 = arith.constant 0 : index
    %c2_19 = arith.constant 2 : index
    %c0_20 = arith.constant 0 : index
    %c1_21 = arith.constant 1 : index
    %12 = vector.load %arg1[%c0_18, %c2_19, %c0_20, %c1_21] : memref<2x4x8x256xbf16, #tpu.memory_space<vmem>>, vector<1x1x8x128xbf16>
    %13 = vector.shape_cast %12 : vector<1x1x8x128xbf16> to vector<8x128xbf16>
    %c0_22 = arith.constant 0 : index
    %c0_23 = arith.constant 0 : index
    %c0_24 = arith.constant 0 : index
    %c10 = arith.constant 10 : index
    %14 = vector.load %arg1[%c0_22, %c0_23, %c0_24, %c10] : memref<2x4x8x256xbf16, #tpu.memory_space<vmem>>, vector<1x1x8x128xbf16>
    %15 = vector.shape_cast %14 : vector<1x1x8x128xbf16> to vector<8x128xbf16>
    %c0_25 = arith.constant 0 : index
    %c1_26 = arith.constant 1 : index
    %c0_27 = arith.constant 0 : index
    %c10_28 = arith.constant 10 : index
    %16 = vector.load %arg1[%c0_25, %c1_26, %c0_27, %c10_28] : memref<2x4x8x256xbf16, #tpu.memory_space<vmem>>, vector<1x1x8x128xbf16>
    %17 = vector.shape_cast %16 : vector<1x1x8x128xbf16> to vector<8x128xbf16>
    %c0_29 = arith.constant 0 : index
    %c0_30 = arith.constant 0 : index
    %c0_31 = arith.constant 0 : index
    %c11 = arith.constant 11 : index
    %18 = vector.load %arg1[%c0_29, %c0_30, %c0_31, %c11] : memref<2x4x8x256xbf16, #tpu.memory_space<vmem>>, vector<1x1x8x128xbf16>
    %19 = vector.shape_cast %18 : vector<1x1x8x128xbf16> to vector<8x128xbf16>
    %20 = tpu.concatenate %3, %5, %7, %9, %11, %13, %15, %17, %19 in 0 : vector<8x128xbf16>, vector<8x128xbf16>, vector<8x128xbf16>, vector<8x128xbf16>, vector<8x128xbf16>, vector<8x128xbf16>, vector<8x128xbf16>, vector<8x128xbf16>, vector<8x128xbf16> -> vector<72x128xbf16>
    %c0_32 = arith.constant 0 : index
    %c0_33 = arith.constant 0 : index
    %21 = vector.load %arg2[%c0_32, %c0_33] : memref<8x72xbf16, #tpu.memory_space<vmem>>, vector<8x72xbf16>
    %cst_34 = arith.constant dense<0.000000e+00> : vector<8x128xf32>
    %22 = tpu.matmul %21, %20, %cst_34 {dimension_numbers = #tpu.dot_dimension_numbers<[1], [0], [0], [1], [0, 0, 1, 1], [], []>} : vector<8x72xbf16>, vector<72x128xbf16>, vector<8x128xf32> -> vector<8x128xf32>
    %c0_35 = arith.constant 0 : index
    %c0_36 = arith.constant 0 : index
    %23 = vector.load %arg3[%c0_35, %c0_36] : memref<8x1xf32, #tpu.memory_space<vmem>>, vector<8x1xf32>
    %24 = vector.broadcast %23 : vector<8x1xf32> to vector<8x128xf32>
    %25 = arith.addf %22, %24 : vector<8x128xf32>
    %cst_37 = arith.constant 0.000000e+00 : f32
    %26 = vector.broadcast %cst_37 : f32 to vector<8x128xf32>
    %27 = arith.maximumf %25, %26 : vector<8x128xf32>
    %c0_38 = arith.constant 0 : index
    %c0_39 = arith.constant 0 : index
    %28 = vector.load %arg6[%c0_38, %c0_39] : memref<1x128xf32, #tpu.memory_space<vmem>>, vector<1x128xf32>
    %29 = vector.broadcast %28 : vector<1x128xf32> to vector<8x128xf32>
    %30 = arith.mulf %27, %29 : vector<8x128xf32>
    %31 = arith.truncf %30 : vector<8x128xf32> to vector<8x128xbf16>
    %c0_40 = arith.constant 0 : index
    %c11_41 = arith.constant 11 : index
    %32 = vector.load %arg8[%c0_40, %c11_41] : memref<8x256xbf16, #tpu.memory_space<vmem>>, vector<8x128xbf16>
    tpu.vector_store %arg8[%c0_40, %c11_41], %31 {strides = array<i32>} : memref<8x256xbf16, #tpu.memory_space<vmem>>, vector<8x128xbf16>,
    %c0_42 = arith.constant 0 : index
    %c0_43 = arith.constant 0 : index
    %33 = vector.load %arg8[%c0_42, %c0_43] : memref<8x256xbf16, #tpu.memory_space<vmem>>, vector<8x128xbf16>
    %c0_44 = arith.constant 0 : index
    %c1_45 = arith.constant 1 : index
    %34 = vector.load %arg8[%c0_44, %c1_45] : memref<8x256xbf16, #tpu.memory_space<vmem>>, vector<8x128xbf16>
    %c0_46 = arith.constant 0 : index
    %c2_47 = arith.constant 2 : index
    %35 = vector.load %arg8[%c0_46, %c2_47] : memref<8x256xbf16, #tpu.memory_space<vmem>>, vector<8x128xbf16>
    %c0_48 = arith.constant 0 : index
    %c10_49 = arith.constant 10 : index
    %36 = vector.load %arg8[%c0_48, %c10_49] : memref<8x256xbf16, #tpu.memory_space<vmem>>, vector<8x128xbf16>
    %c0_50 = arith.constant 0 : index
    %c11_51 = arith.constant 11 : index
    %37 = vector.load %arg8[%c0_50, %c11_51] : memref<8x256xbf16, #tpu.memory_space<vmem>>, vector<8x128xbf16>
    %c0_52 = arith.constant 0 : index
    %c12 = arith.constant 12 : index
    %38 = vector.load %arg8[%c0_52, %c12] : memref<8x256xbf16, #tpu.memory_space<vmem>>, vector<8x128xbf16>
    %c0_53 = arith.constant 0 : index
    %c20 = arith.constant 20 : index
    %39 = vector.load %arg8[%c0_53, %c20] : memref<8x256xbf16, #tpu.memory_space<vmem>>, vector<8x128xbf16>
    %c0_54 = arith.constant 0 : index
    %c21 = arith.constant 21 : index
    %40 = vector.load %arg8[%c0_54, %c21] : memref<8x256xbf16, #tpu.memory_space<vmem>>, vector<8x128xbf16>
    %c0_55 = arith.constant 0 : index
    %c22 = arith.constant 22 : index
    %41 = vector.load %arg8[%c0_55, %c22] : memref<8x256xbf16, #tpu.memory_space<vmem>>, vector<8x128xbf16>
    %42 = tpu.concatenate %33, %34, %35, %36, %37, %38, %39, %40, %41 in 0 : vector<8x128xbf16>, vector<8x128xbf16>, vector<8x128xbf16>, vector<8x128xbf16>, vector<8x128xbf16>, vector<8x128xbf16>, vector<8x128xbf16>, vector<8x128xbf16>, vector<8x128xbf16> -> vector<72x128xbf16>
    %c0_56 = arith.constant 0 : index
    %c0_57 = arith.constant 0 : index
    %43 = vector.load %arg4[%c0_56, %c0_57] : memref<8x72xbf16, #tpu.memory_space<vmem>>, vector<8x72xbf16>
    %cst_58 = arith.constant dense<0.000000e+00> : vector<8x128xf32>
    %44 = tpu.matmul %43, %42, %cst_58 {dimension_numbers = #tpu.dot_dimension_numbers<[1], [0], [0], [1], [0, 0, 1, 1], [], []>} : vector<8x72xbf16>, vector<72x128xbf16>, vector<8x128xf32> -> vector<8x128xf32>
    %c0_59 = arith.constant 0 : index
    %c0_60 = arith.constant 0 : index
    %45 = vector.load %arg5[%c0_59, %c0_60] : memref<8x1xf32, #tpu.memory_space<vmem>>, vector<8x1xf32>
    %46 = vector.broadcast %45 : vector<8x1xf32> to vector<8x128xf32>
    %47 = arith.addf %44, %46 : vector<8x128xf32>
    %cst_61 = arith.constant 0.000000e+00 : f32
    %48 = vector.broadcast %cst_61 : f32 to vector<8x128xf32>
    %49 = arith.maximumf %47, %48 : vector<8x128xf32>
    %c0_62 = arith.constant 0 : index
    %c0_63 = arith.constant 0 : index
    %c0_64 = arith.constant 0 : index
    %50 = vector.load %arg7[%c0_62, %c0_63, %c0_64] : memref<2x8x128xf32, #tpu.memory_space<vmem>>, vector<1x8x128xf32>
    %51 = vector.shape_cast %50 : vector<1x8x128xf32> to vector<8x128xf32>
    %52 = vector.shape_cast %49 : vector<8x128xf32> to vector<1x8x128xf32>
    tpu.vector_store %arg7[%c0_62, %c0_63, %c0_64], %52 {strides = array<i32>} : memref<2x8x128xf32, #tpu.memory_space<vmem>>, vector<1x8x128xf32>,
    %c1_65 = arith.constant 1 : index
    %c0_66 = arith.constant 0 : index
    %c0_67 = arith.constant 0 : index
    %c0_68 = arith.constant 0 : index
    %53 = vector.load %arg1[%c1_65, %c0_66, %c0_67, %c0_68] : memref<2x4x8x256xbf16, #tpu.memory_space<vmem>>, vector<1x1x8x128xbf16>
    %54 = vector.shape_cast %53 : vector<1x1x8x128xbf16> to vector<8x128xbf16>
    %c1_69 = arith.constant 1 : index
    %c1_70 = arith.constant 1 : index
    %c0_71 = arith.constant 0 : index
    %c0_72 = arith.constant 0 : index
    %55 = vector.load %arg1[%c1_69, %c1_70, %c0_71, %c0_72] : memref<2x4x8x256xbf16, #tpu.memory_space<vmem>>, vector<1x1x8x128xbf16>
    %56 = vector.shape_cast %55 : vector<1x1x8x128xbf16> to vector<8x128xbf16>
    %c1_73 = arith.constant 1 : index
    %c0_74 = arith.constant 0 : index
    %c0_75 = arith.constant 0 : index
    %c1_76 = arith.constant 1 : index
    %57 = vector.load %arg1[%c1_73, %c0_74, %c0_75, %c1_76] : memref<2x4x8x256xbf16, #tpu.memory_space<vmem>>, vector<1x1x8x128xbf16>
    %58 = vector.shape_cast %57 : vector<1x1x8x128xbf16> to vector<8x128xbf16>
    %c1_77 = arith.constant 1 : index
    %c2_78 = arith.constant 2 : index
    %c0_79 = arith.constant 0 : index
    %c0_80 = arith.constant 0 : index
    %59 = vector.load %arg1[%c1_77, %c2_78, %c0_79, %c0_80] : memref<2x4x8x256xbf16, #tpu.memory_space<vmem>>, vector<1x1x8x128xbf16>
    %60 = vector.shape_cast %59 : vector<1x1x8x128xbf16> to vector<8x128xbf16>
    %c1_81 = arith.constant 1 : index
    %c3_82 = arith.constant 3 : index
    %c0_83 = arith.constant 0 : index
    %c0_84 = arith.constant 0 : index
    %61 = vector.load %arg1[%c1_81, %c3_82, %c0_83, %c0_84] : memref<2x4x8x256xbf16, #tpu.memory_space<vmem>>, vector<1x1x8x128xbf16>
    %62 = vector.shape_cast %61 : vector<1x1x8x128xbf16> to vector<8x128xbf16>
    %c1_85 = arith.constant 1 : index
    %c2_86 = arith.constant 2 : index
    %c0_87 = arith.constant 0 : index
    %c1_88 = arith.constant 1 : index
    %63 = vector.load %arg1[%c1_85, %c2_86, %c0_87, %c1_88] : memref<2x4x8x256xbf16, #tpu.memory_space<vmem>>, vector<1x1x8x128xbf16>
    %64 = vector.shape_cast %63 : vector<1x1x8x128xbf16> to vector<8x128xbf16>
    %c1_89 = arith.constant 1 : index
    %c0_90 = arith.constant 0 : index
    %c0_91 = arith.constant 0 : index
    %c10_92 = arith.constant 10 : index
    %65 = vector.load %arg1[%c1_89, %c0_90, %c0_91, %c10_92] : memref<2x4x8x256xbf16, #tpu.memory_space<vmem>>, vector<1x1x8x128xbf16>
    %66 = vector.shape_cast %65 : vector<1x1x8x128xbf16> to vector<8x128xbf16>
    %c1_93 = arith.constant 1 : index
    %c1_94 = arith.constant 1 : index
    %c0_95 = arith.constant 0 : index
    %c10_96 = arith.constant 10 : index
    %67 = vector.load %arg1[%c1_93, %c1_94, %c0_95, %c10_96] : memref<2x4x8x256xbf16, #tpu.memory_space<vmem>>, vector<1x1x8x128xbf16>
    %68 = vector.shape_cast %67 : vector<1x1x8x128xbf16> to vector<8x128xbf16>
    %c1_97 = arith.constant 1 : index
    %c0_98 = arith.constant 0 : index
    %c0_99 = arith.constant 0 : index
    %c11_100 = arith.constant 11 : index
    %69 = vector.load %arg1[%c1_97, %c0_98, %c0_99, %c11_100] : memref<2x4x8x256xbf16, #tpu.memory_space<vmem>>, vector<1x1x8x128xbf16>
    %70 = vector.shape_cast %69 : vector<1x1x8x128xbf16> to vector<8x128xbf16>
    %71 = tpu.concatenate %54, %56, %58, %60, %62, %64, %66, %68, %70 in 0 : vector<8x128xbf16>, vector<8x128xbf16>, vector<8x128xbf16>, vector<8x128xbf16>, vector<8x128xbf16>, vector<8x128xbf16>, vector<8x128xbf16>, vector<8x128xbf16>, vector<8x128xbf16> -> vector<72x128xbf16>
    %c0_101 = arith.constant 0 : index
    %c0_102 = arith.constant 0 : index
    %72 = vector.load %arg2[%c0_101, %c0_102] : memref<8x72xbf16, #tpu.memory_space<vmem>>, vector<8x72xbf16>
    %cst_103 = arith.constant dense<0.000000e+00> : vector<8x128xf32>
    %73 = tpu.matmul %72, %71, %cst_103 {dimension_numbers = #tpu.dot_dimension_numbers<[1], [0], [0], [1], [0, 0, 1, 1], [], []>} : vector<8x72xbf16>, vector<72x128xbf16>, vector<8x128xf32> -> vector<8x128xf32>
    %c0_104 = arith.constant 0 : index
    %c0_105 = arith.constant 0 : index
    %74 = vector.load %arg3[%c0_104, %c0_105] : memref<8x1xf32, #tpu.memory_space<vmem>>, vector<8x1xf32>
    %75 = vector.broadcast %74 : vector<8x1xf32> to vector<8x128xf32>
    %76 = arith.addf %73, %75 : vector<8x128xf32>
    %cst_106 = arith.constant 0.000000e+00 : f32
    %77 = vector.broadcast %cst_106 : f32 to vector<8x128xf32>
    %78 = arith.maximumf %76, %77 : vector<8x128xf32>
    %c0_107 = arith.constant 0 : index
    %c0_108 = arith.constant 0 : index
    %79 = vector.load %arg6[%c0_107, %c0_108] : memref<1x128xf32, #tpu.memory_space<vmem>>, vector<1x128xf32>
    %80 = vector.broadcast %79 : vector<1x128xf32> to vector<8x128xf32>
    %81 = arith.mulf %78, %80 : vector<8x128xf32>
    %82 = arith.truncf %81 : vector<8x128xf32> to vector<8x128xbf16>
    %c0_109 = arith.constant 0 : index
    %c11_110 = arith.constant 11 : index
    %83 = vector.load %arg8[%c0_109, %c11_110] : memref<8x256xbf16, #tpu.memory_space<vmem>>, vector<8x128xbf16>
    tpu.vector_store %arg8[%c0_109, %c11_110], %82 {strides = array<i32>} : memref<8x256xbf16, #tpu.memory_space<vmem>>, vector<8x128xbf16>,
    %c0_111 = arith.constant 0 : index
    %c0_112 = arith.constant 0 : index
    %84 = vector.load %arg8[%c0_111, %c0_112] : memref<8x256xbf16, #tpu.memory_space<vmem>>, vector<8x128xbf16>
    %c0_113 = arith.constant 0 : index
    %c1_114 = arith.constant 1 : index
    %85 = vector.load %arg8[%c0_113, %c1_114] : memref<8x256xbf16, #tpu.memory_space<vmem>>, vector<8x128xbf16>
    %c0_115 = arith.constant 0 : index
    %c2_116 = arith.constant 2 : index
    %86 = vector.load %arg8[%c0_115, %c2_116] : memref<8x256xbf16, #tpu.memory_space<vmem>>, vector<8x128xbf16>
    %c0_117 = arith.constant 0 : index
    %c10_118 = arith.constant 10 : index
    %87 = vector.load %arg8[%c0_117, %c10_118] : memref<8x256xbf16, #tpu.memory_space<vmem>>, vector<8x128xbf16>
    %c0_119 = arith.constant 0 : index
    %c11_120 = arith.constant 11 : index
    %88 = vector.load %arg8[%c0_119, %c11_120] : memref<8x256xbf16, #tpu.memory_space<vmem>>, vector<8x128xbf16>
    %c0_121 = arith.constant 0 : index
    %c12_122 = arith.constant 12 : index
    %89 = vector.load %arg8[%c0_121, %c12_122] : memref<8x256xbf16, #tpu.memory_space<vmem>>, vector<8x128xbf16>
    %c0_123 = arith.constant 0 : index
    %c20_124 = arith.constant 20 : index
    %90 = vector.load %arg8[%c0_123, %c20_124] : memref<8x256xbf16, #tpu.memory_space<vmem>>, vector<8x128xbf16>
    %c0_125 = arith.constant 0 : index
    %c21_126 = arith.constant 21 : index
    %91 = vector.load %arg8[%c0_125, %c21_126] : memref<8x256xbf16, #tpu.memory_space<vmem>>, vector<8x128xbf16>
    %c0_127 = arith.constant 0 : index
    %c22_128 = arith.constant 22 : index
    %92 = vector.load %arg8[%c0_127, %c22_128] : memref<8x256xbf16, #tpu.memory_space<vmem>>, vector<8x128xbf16>
    %93 = tpu.concatenate %84, %85, %86, %87, %88, %89, %90, %91, %92 in 0 : vector<8x128xbf16>, vector<8x128xbf16>, vector<8x128xbf16>, vector<8x128xbf16>, vector<8x128xbf16>, vector<8x128xbf16>, vector<8x128xbf16>, vector<8x128xbf16>, vector<8x128xbf16> -> vector<72x128xbf16>
    %c0_129 = arith.constant 0 : index
    %c0_130 = arith.constant 0 : index
    %94 = vector.load %arg4[%c0_129, %c0_130] : memref<8x72xbf16, #tpu.memory_space<vmem>>, vector<8x72xbf16>
    %cst_131 = arith.constant dense<0.000000e+00> : vector<8x128xf32>
    %95 = tpu.matmul %94, %93, %cst_131 {dimension_numbers = #tpu.dot_dimension_numbers<[1], [0], [0], [1], [0, 0, 1, 1], [], []>} : vector<8x72xbf16>, vector<72x128xbf16>, vector<8x128xf32> -> vector<8x128xf32>
    %c0_132 = arith.constant 0 : index
    %c0_133 = arith.constant 0 : index
    %96 = vector.load %arg5[%c0_132, %c0_133] : memref<8x1xf32, #tpu.memory_space<vmem>>, vector<8x1xf32>
    %97 = vector.broadcast %96 : vector<8x1xf32> to vector<8x128xf32>
    %98 = arith.addf %95, %97 : vector<8x128xf32>
    %cst_134 = arith.constant 0.000000e+00 : f32
    %99 = vector.broadcast %cst_134 : f32 to vector<8x128xf32>
    %100 = arith.maximumf %98, %99 : vector<8x128xf32>
    %c1_135 = arith.constant 1 : index
    %c0_136 = arith.constant 0 : index
    %c0_137 = arith.constant 0 : index
    %101 = vector.load %arg7[%c1_135, %c0_136, %c0_137] : memref<2x8x128xf32, #tpu.memory_space<vmem>>, vector<1x8x128xf32>
    %102 = vector.shape_cast %101 : vector<1x8x128xf32> to vector<8x128xf32>
    %103 = vector.shape_cast %100 : vector<8x128xf32> to vector<1x8x128xf32>
    tpu.vector_store %arg7[%c1_135, %c0_136, %c0_137], %103 {strides = array<i32>} : memref<2x8x128xf32, #tpu.memory_space<vmem>>, vector<1x8x128xf32>,
    return
  }
  func.func @transform_0(%arg0: i32) -> (i32, i32, i32, i32) {
    %c0_i32 = arith.constant 0 : i32
    %c0_i32_0 = arith.constant 0 : i32
    %c0_i32_1 = arith.constant 0 : i32
    %c0_i32_2 = arith.constant 0 : i32
    return %arg0, %c0_i32, %c0_i32_0, %c0_i32_1 : i32, i32, i32, i32
  }
  func.func @transform_1(%arg0: i32) -> (i32, i32) {
    %c0_i32 = arith.constant 0 : i32
    %c0_i32_0 = arith.constant 0 : i32
    %c0_i32_1 = arith.constant 0 : i32
    return %c0_i32, %c0_i32_0 : i32, i32
  }
  func.func @transform_2(%arg0: i32) -> (i32, i32) {
    %c0_i32 = arith.constant 0 : i32
    %c0_i32_0 = arith.constant 0 : i32
    %c0_i32_1 = arith.constant 0 : i32
    return %c0_i32, %c0_i32_0 : i32, i32
  }
  func.func @transform_3(%arg0: i32) -> (i32, i32) {
    %c0_i32 = arith.constant 0 : i32
    %c0_i32_0 = arith.constant 0 : i32
    %c0_i32_1 = arith.constant 0 : i32
    return %c0_i32, %c0_i32_0 : i32, i32
  }
  func.func @transform_4(%arg0: i32) -> (i32, i32) {
    %c0_i32 = arith.constant 0 : i32
    %c0_i32_0 = arith.constant 0 : i32
    %c0_i32_1 = arith.constant 0 : i32
    return %c0_i32, %c0_i32_0 : i32, i32
  }
  func.func @transform_5(%arg0: i32) -> (i32, i32) {
    %c0_i32 = arith.constant 0 : i32
    %c0_i32_0 = arith.constant 0 : i32
    %c0_i32_1 = arith.constant 0 : i32
    return %c0_i32, %c0_i32_0 : i32, i32
  }
  func.func @transform_6(%arg0: i32) -> (i32, i32, i32) {
    %c0_i32 = arith.constant 0 : i32
    %c0_i32_0 = arith.constant 0 : i32
    %c0_i32_1 = arith.constant 0 : i32
    return %arg0, %c0_i32, %c0_i32_0 : i32, i32, i32
  }
}

</mosaic_0001>

<llo_original>
// kernel: bottleneck33_forward.1
$region0: #{bottleneck33_forward.1}
  #allocation0 [shape = 'u32[]', space=smem, size = 0x4, offset = 0x4, fixed_abs, tag = 'smem constant byte address 0x4 - core index']
  #allocation1 [shape = 'u32[144,128]{1,0:T(1,128)}', space=vmem, size = 0x12000, scoped, tag = 'internal scratch']
  #allocation2 [shape = 'bf16[8,256]{1,0:T(8,128)(2,1)}', space=vmem, size = 0x1000, scoped, tag = 'scratch operand']
  %s0 = inlined_call_operand.vmem [shape: bf16[4,4,8,256], index: 0, kind: input, shape index: {}]
  %s1 = inlined_call_operand.vmem [shape: bf16[8,72], index: 1, kind: input, shape index: {}]
  %s2 = inlined_call_operand.vmem [shape: f32[8,1], index: 2, kind: input, shape index: {}]
  %s3 = inlined_call_operand.vmem [shape: bf16[8,72], index: 3, kind: input, shape index: {}]
  %s4 = inlined_call_operand.vmem [shape: f32[8,1], index: 4, kind: input, shape index: {}]
  %s5 = inlined_call_operand.vmem [shape: f32[1,128], index: 5, kind: input, shape index: {}]
  %s6 = inlined_call_operand.vmem [shape: f32[4,8,128], index: 6, kind: output, shape index: {}]
  %s7 = sld [smem:[#allocation0]]
  $region57: #{bottleneck33_forward.1} parent=0
    _
  %s9 = ssub.s32 1, %s7
  %s10 = scalar_select 0, %s9, %s7
  loop: start=0, step=1, limit=4
  $region2: #{bottleneck33_forward.1} parent=0 // loop_pre_header
    _
  $region3: #{bottleneck33_forward.1} parent=0 // loop_header
    %s12 = sphi 0, %s16
    %p13 = scmp.ge.s32.totalorder %s12, 4
    %s22 = sphi 0, %s24
    %s25 = sphi 0, %s22
    %s26 = sphi 0, %s25
    %s42 = sphi 0, %s26
    %s46 = sphi 0, %s46
    %s48 = sphi 0, %s46
    %s49 = sphi 0, %s48
    %s63 = sphi 0, %s49
    %s67 = sphi 0, %s67
    %s69 = sphi 0, %s67
    %s70 = sphi 0, %s69
    %s84 = sphi 0, %s70
    %s88 = sphi 0, %s88
    %s90 = sphi 0, %s88
    %s91 = sphi 0, %s90
    %s105 = sphi 0, %s91
    %s109 = sphi 0, %s109
    %s111 = sphi 0, %s109
    %s112 = sphi 0, %s111
    %s126 = sphi 0, %s112
    %s130 = sphi 0, %s130
    %s132 = sphi 0, %s130
    %s133 = sphi 0, %s132
    %s147 = sphi 0, %s133
    %s153 = sphi 0, %s155
    %s156 = sphi 0, %s153
    %s157 = sphi 0, %s156
    %s173 = sphi 0, %s157
  $region4: #{bottleneck33_forward.1} parent=0 // loop_header_branch
    %15 = sbr.rel (%p13) target = $region8
  $region5: #{bottleneck33_forward.1} parent=0 // loop_body
    %s17 = ssub.s32 %s12, 1
    %s18 = ssub.s32 %s12, 2
    %s19 = sadd.s32 %s12, 1
    %s20 = ssub.s32 %s12, %s19
    %p21 = scmp.eq.s32.totalorder %s20, 0
    %s23 = sadd.s32 %s22, 1
    %s24 = scalar_select %p21, %s22, %s23
    %p27 = pneg %p21
    %p28 = scmp.eq.s32.totalorder %s12, 1
    %p29 = por %p27, %p28
    %p30 = scmp.ne.s32.totalorder %s22, %s25
    %p31 = scmp.eq.s32.totalorder %s12, 0
    %p32 = por %p30, %p31
    %p33 = scmp.ne.s32.totalorder %s22, %s25
    %p34 = scmp.eq.s32.totalorder %s17, 1
    %p35 = por %p33, %p34
    %p36 = scmp.ne.s32.totalorder %s25, %s26
    %p37 = scmp.eq.s32.totalorder %s17, 0
    %p38 = por %p36, %p37
    %p39 = scmp.ne.s32.totalorder %s25, %s26
    %p40 = scmp.eq.s32.totalorder %s18, 1
    %p41 = por %p39, %p40
    %p43 = scmp.ne.s32.totalorder %s26, %s42
    %p44 = scmp.eq.s32.totalorder %s18, 0
    %p45 = por %p43, %p44
    %s47 = sadd.s32 %s46, 1
    %p50 = scmp.eq.s32.totalorder %s12, 1
    %p51 = scmp.ne.s32.totalorder %s46, %s48
    %p52 = scmp.eq.s32.totalorder %s12, 0
    %p53 = por %p51, %p52
    %p54 = scmp.ne.s32.totalorder %s46, %s48
    %p55 = scmp.eq.s32.totalorder %s17, 1
    %p56 = por %p54, %p55
    %p57 = scmp.ne.s32.totalorder %s48, %s49
    %p58 = scmp.eq.s32.totalorder %s17, 0
    %p59 = por %p57, %p58
    %p60 = scmp.ne.s32.totalorder %s48, %s49
    %p61 = scmp.eq.s32.totalorder %s18, 1
    %p62 = por %p60, %p61
    %p64 = scmp.ne.s32.totalorder %s49, %s63
    %p65 = scmp.eq.s32.totalorder %s18, 0
    %p66 = por %p64, %p65
    %s68 = sadd.s32 %s67, 1
    %p71 = scmp.eq.s32.totalorder %s12, 1
    %p72 = scmp.ne.s32.totalorder %s67, %s69
    %p73 = scmp.eq.s32.totalorder %s12, 0
    %p74 = por %p72, %p73
    %p75 = scmp.ne.s32.totalorder %s67, %s69
    %p76 = scmp.eq.s32.totalorder %s17, 1
    %p77 = por %p75, %p76
    %p78 = scmp.ne.s32.totalorder %s69, %s70
    %p79 = scmp.eq.s32.totalorder %s17, 0
    %p80 = por %p78, %p79
    %p81 = scmp.ne.s32.totalorder %s69, %s70
    %p82 = scmp.eq.s32.totalorder %s18, 1
    %p83 = por %p81, %p82
    %p85 = scmp.ne.s32.totalorder %s70, %s84
    %p86 = scmp.eq.s32.totalorder %s18, 0
    %p87 = por %p85, %p86
    %s89 = sadd.s32 %s88, 1
    %p92 = scmp.eq.s32.totalorder %s12, 1
    %p93 = scmp.ne.s32.totalorder %s88, %s90
    %p94 = scmp.eq.s32.totalorder %s12, 0
    %p95 = por %p93, %p94
    %p96 = scmp.ne.s32.totalorder %s88, %s90
    %p97 = scmp.eq.s32.totalorder %s17, 1
    %p98 = por %p96, %p97
    %p99 = scmp.ne.s32.totalorder %s90, %s91
    %p100 = scmp.eq.s32.totalorder %s17, 0
    %p101 = por %p99, %p100
    %p102 = scmp.ne.s32.totalorder %s90, %s91
    %p103 = scmp.eq.s32.totalorder %s18, 1
    %p104 = por %p102, %p103
    %p106 = scmp.ne.s32.totalorder %s91, %s105
    %p107 = scmp.eq.s32.totalorder %s18, 0
    %p108 = por %p106, %p107
    %s110 = sadd.s32 %s109, 1
    %p113 = scmp.eq.s32.totalorder %s12, 1
    %p114 = scmp.ne.s32.totalorder %s109, %s111
    %p115 = scmp.eq.s32.totalorder %s12, 0
    %p116 = por %p114, %p115
    %p117 = scmp.ne.s32.totalorder %s109, %s111
    %p118 = scmp.eq.s32.totalorder %s17, 1
    %p119 = por %p117, %p118
    %p120 = scmp.ne.s32.totalorder %s111, %s112
    %p121 = scmp.eq.s32.totalorder %s17, 0
    %p122 = por %p120, %p121
    %p123 = scmp.ne.s32.totalorder %s111, %s112
    %p124 = scmp.eq.s32.totalorder %s18, 1
    %p125 = por %p123, %p124
    %p127 = scmp.ne.s32.totalorder %s112, %s126
    %p128 = scmp.eq.s32.totalorder %s18, 0
    %p129 = por %p127, %p128
    %s131 = sadd.s32 %s130, 1
    %p134 = scmp.eq.s32.totalorder %s12, 1
    %p135 = scmp.ne.s32.totalorder %s130, %s132
    %p136 = scmp.eq.s32.totalorder %s12, 0
    %p137 = por %p135, %p136
    %p138 = scmp.ne.s32.totalorder %s130, %s132
    %p139 = scmp.eq.s32.totalorder %s17, 1
    %p140 = por %p138, %p139
    %p141 = scmp.ne.s32.totalorder %s132, %s133
    %p142 = scmp.eq.s32.totalorder %s17, 0
    %p143 = por %p141, %p142
    %p144 = scmp.ne.s32.totalorder %s132, %s133
    %p145 = scmp.eq.s32.totalorder %s18, 1
    %p146 = por %p144, %p145
    %p148 = scmp.ne.s32.totalorder %s133, %s147
    %p149 = scmp.eq.s32.totalorder %s18, 0
    %p150 = por %p148, %p149
    %s151 = ssub.s32 %s12, %s19
    %p152 = scmp.eq.s32.totalorder %s151, 0
    %s154 = sadd.s32 %s153, 1
    %s155 = scalar_select %p152, %s153, %s154
    %p158 = pneg %p152
    %p159 = scmp.eq.s32.totalorder %s12, 1
    %p160 = por %p158, %p159
    %p161 = scmp.ne.s32.totalorder %s153, %s156
    %p162 = scmp.eq.s32.totalorder %s12, 0
    %p163 = por %p161, %p162
    %p164 = scmp.ne.s32.totalorder %s153, %s156
    %p165 = scmp.eq.s32.totalorder %s17, 1
    %p166 = por %p164, %p165
    %p167 = scmp.ne.s32.totalorder %s156, %s157
    %p168 = scmp.eq.s32.totalorder %s17, 0
    %p169 = por %p167, %p168
    %p170 = scmp.ne.s32.totalorder %s156, %s157
    %p171 = scmp.eq.s32.totalorder %s18, 1
    %p172 = por %p170, %p171
    %p174 = scmp.ne.s32.totalorder %s157, %s173
    %p175 = scmp.eq.s32.totalorder %s18, 0
    %p176 = por %p174, %p175
    %p177 = scmp.le.s32.totalorder 1, %s12
    %p178 = scmp.lt.s32.totalorder %s12, 3
    %p179 = pnand %p177, %p178
    %p180 = pneg %p179
    // Predicated region
    $region9: #{bottleneck33_forward.1} parent=5 // pred_check
      _
    $region10: #{bottleneck33_forward.1} parent=5 // pred_check_branch
      %182 = sbr.rel (%p179) target = $region12
    $region11: #{bottleneck33_forward.1} parent=5 // pred_region
      %s183 = ssub.s32 %s12, 1
      // Predicated region
      $region13: #{bottleneck33_forward.1} parent=11 // pred_check
        %p184 = pneg %p59
      $region14: #{bottleneck33_forward.1} parent=11 // pred_check_branch
        %186 = sbr.rel (%p184) target = $region16
      $region15: #{bottleneck33_forward.1} parent=11 // pred_region
        _
      $region16: #{bottleneck33_forward.1} parent=11 // pred_fallthru
        _
      // Predicated region
      $region17: #{bottleneck33_forward.1} parent=11 // pred_check
        %p187 = pneg %p80
      $region18: #{bottleneck33_forward.1} parent=11 // pred_check_branch
        %189 = sbr.rel (%p187) target = $region20
      $region19: #{bottleneck33_forward.1} parent=11 // pred_region
        _
      $region20: #{bottleneck33_forward.1} parent=11 // pred_fallthru
        _
      // Predicated region
      $region21: #{bottleneck33_forward.1} parent=11 // pred_check
        %p190 = pneg %p101
      $region22: #{bottleneck33_forward.1} parent=11 // pred_check_branch
        %192 = sbr.rel (%p190) target = $region24
      $region23: #{bottleneck33_forward.1} parent=11 // pred_region
        _
      $region24: #{bottleneck33_forward.1} parent=11 // pred_fallthru
        _
      // Predicated region
      $region25: #{bottleneck33_forward.1} parent=11 // pred_check
        %p193 = pneg %p122
      $region26: #{bottleneck33_forward.1} parent=11 // pred_check_branch
        %195 = sbr.rel (%p193) target = $region28
      $region27: #{bottleneck33_forward.1} parent=11 // pred_region
        _
      $region28: #{bottleneck33_forward.1} parent=11 // pred_fallthru
        _
      // Predicated region
      $region29: #{bottleneck33_forward.1} parent=11 // pred_check
        %p196 = pneg %p143
      $region30: #{bottleneck33_forward.1} parent=11 // pred_check_branch
        %198 = sbr.rel (%p196) target = $region32
      $region31: #{bottleneck33_forward.1} parent=11 // pred_region
        _
      $region32: #{bottleneck33_forward.1} parent=11 // pred_fallthru
        _
    $region12: #{bottleneck33_forward.1} parent=5 // pred_fallthru
      _
    %p199 = scmp.lt.s32.totalorder %s12, 2
    // Predicated region
    $region33: #{bottleneck33_forward.1} parent=5 // pred_check
      %p200 = pneg %p199
    $region34: #{bottleneck33_forward.1} parent=5 // pred_check_branch
      %202 = sbr.rel (%p200) target = $region36
    $region35: #{bottleneck33_forward.1} parent=5 // pred_region
      // Predicated region
      $region37: #{bottleneck33_forward.1} parent=35 // pred_check
        %p203 = pneg %p32
      $region38: #{bottleneck33_forward.1} parent=35 // pred_check_branch
        %205 = sbr.rel (%p203) target = $region40
      $region39: #{bottleneck33_forward.1} parent=35 // pred_region
        %s206 = smul.u32 2, %s12
        %p207 = scmp.lt.s32.totalorder %s206, 3
        %s208 = scalar_select %p207, %s206, 3
        %s209 = smul.addr %s208, 8
        %s210 = smul.addr %s209, 4
        %s211 = scalar_lea.vmem %s0, %s210
        %s212 = smul.u32 2, %s12
      $region40: #{bottleneck33_forward.1} parent=35 // pred_fallthru
        _
    $region36: #{bottleneck33_forward.1} parent=5 // pred_fallthru
      _
    %p213 = scmp.le.s32.totalorder 1, %s12
    %p214 = scmp.lt.s32.totalorder %s12, 3
    %p215 = pnand %p213, %p214
    %p216 = pneg %p215
    // Predicated region
    $region41: #{bottleneck33_forward.1} parent=5 // pred_check
      _
    $region42: #{bottleneck33_forward.1} parent=5 // pred_check_branch
      %218 = sbr.rel (%p215) target = $region44
    $region43: #{bottleneck33_forward.1} parent=5 // pred_region
      %s219 = ssub.s32 %s12, 1
      %s220 = smul.u32 2, %s17
      %p221 = scmp.lt.s32.totalorder %s220, 3
      %s222 = scalar_select %p221, %s220, 3
      %s223 = smul.addr %s222, 8
      %s224 = smul.addr %s223, 4
      %s225 = scalar_lea.vmem %s0, %s224
      %p226 = pneg %p38
      %p227 = pneg %p35
      %p228 = pneg %p59
      %p229 = pneg %p56
      %p230 = pneg %p80
      %p231 = pneg %p77
      %p232 = pneg %p101
      %p233 = pneg %p98
      %p234 = pneg %p122
      %p235 = pneg %p119
      %p236 = pneg %p143
      %p237 = pneg %p140
      %p238 = pneg %p169
      %p239 = pneg %p166
      %s240 = smul.u32 2, %s17
      %p241 = scmp.lt.s32.totalorder %s240, 3
      %s242 = scalar_select %p241, %s240, 3
      %s243 = smul.addr %s242, 8
      %s244 = scalar_lea.vmem %s6, %s243
      %s245 = smul.u32 2, %s17
      %p246 = scmp.lt.s32.totalorder %s245, 3
      %s247 = scalar_select %p246, %s245, 3
      %s248 = smul.addr %s247, 8
      %s249 = smul.addr %s248, 4
      %s250 = scalar_lea.vmem %s0, %s249
      %s251 = smul.u32 2, %s17
      %s252 = smul.u32 2, %s17
      %p253 = scmp.lt.s32.totalorder %s252, 3
      %s254 = scalar_select %p253, %s252, 3
      %s255 = smul.addr %s254, 8
      %s256 = scalar_lea.vmem %s6, %s255
      %s257 = smul.u32 2, %s17
      %259 = vst [vmem:[#allocation2] sm:$0xff] 0
      %v260 = vld [vmem:[%s250] sm:$0xf]
      %s261 = scalar_lea.vmem %s250, 8
      %v262 = vld [vmem:[%s261] sm:$0xf]
      %v263 = vld [vmem:[%s250] sm:$0xff]
      %s264 = scalar_lea.vmem %s250, 16
      %v265 = vld [vmem:[%s264] sm:$0xf]
      %s266 = scalar_lea.vmem %s250, 24
      %v267 = vld [vmem:[%s266] sm:$0xf]
      %v268 = vld [vmem:[%s264] sm:$0xff]
      %v269 = vld [vmem:[%s261] sm:$0xff]
      %v271 = vunpack.c.l.b16 %v262
      %v272 = vpack.c.b16 %v271, %v271
      %v274 = vunpack.c.l.b16 %v263
      %v275 = vunpack.c.h.b16 %v263
      %v276 = vpack.c.b16 %v274, %v274
      %v277 = vpack.c.b16 %v275, %v275
      %278 = vrot.lane.b32.xlu0 %v276, 127
      %v279 = vpop.permute.xlu0 %278
      %280 = vrot.lane.b32.xlu0 %v277, 127
      %v281 = vpop.permute.xlu0 %280
      %vm282 = vcmask 1039360
      %v283 = vsel %vm282, %v279, %v281
      %v285 = vunpack.c.l.b16 %v265
      %v286 = vpack.c.b16 %v285, %v285
      %v288 = vunpack.c.l.b16 %v268
      %v289 = vunpack.c.h.b16 %v268
      %v290 = vpack.c.b16 %v288, %v288
      %v291 = vpack.c.b16 %v289, %v289
      %292 = vrot.lane.b32.xlu0 %v290, 127
      %v293 = vpop.permute.xlu0 %292
      %294 = vrot.lane.b32.xlu0 %v291, 127
      %v295 = vpop.permute.xlu0 %294
      %v296 = vsel %vm282, %v293, %v295
      %297 = vrot.lane.b32.xlu0 %v276, 118
      %v298 = vpop.permute.xlu0 %297
      %299 = vrot.lane.b32.xlu0 %v277, 118
      %v300 = vpop.permute.xlu0 %299
      %vm301 = vcmask 965632
      %v302 = vsel %vm301, %v298, %v300
      %v304 = vunpack.c.l.b16 %v269
      %v305 = vunpack.c.h.b16 %v269
      %v306 = vpack.c.b16 %v304, %v304
      %v307 = vpack.c.b16 %v305, %v305
      %308 = vrot.lane.b32.xlu0 %v306, 118
      %v309 = vpop.permute.xlu0 %308
      %310 = vrot.lane.b32.xlu0 %v307, 118
      %v311 = vpop.permute.xlu0 %310
      %v312 = vsel %vm301, %v309, %v311
      %313 = vrot.lane.b32.xlu0 %v276, 117
      %v314 = vpop.permute.xlu0 %313
      %315 = vrot.lane.b32.xlu0 %v277, 117
      %v316 = vpop.permute.xlu0 %315
      %vm317 = vcmask 957440
      %v318 = vsel %vm317, %v314, %v316
      %vm319 = vcmask 1043456
      %v322 = vsel %vm319, %v260, %v272
      %v326 = vsel %vm319, %v283, %v286
      %v330 = vsel %vm319, %v267, %v296
      %v334 = vsel %vm319, %v302, %v312
      %v336 = vld [vmem:[%s1] sm:$0xf]
      %v337 = vld [vmem:[%s2] sm:$0xff]
      %339 = vset.pattern.permute.xlu0 0
      %340 = vperm.xlu0 %339, %v337
      %v341 = vpop.permute.xlu0 %340
      %vm343 = vcmask 588800
      %v345 = vsel %vm343, %v336, 0
      %v348 = vsel %vm319, %v318, 0
      %350 = vmatprep.subr.bf16.mxu0 0
      %351 = vmatpush1.bf16.msra.mxu0 0
      %352 = vmatprep.subr.bf16.mxu0 0
      %353 = vmatpush1.bf16.msra.mxu0 0
      %354 = vmatprep.subr.bf16.mxu0 0
      %355 = vmatpush1.bf16.msra.mxu0 0
      %356 = vmatprep.subr.bf16.mxu0 0
      %357 = vmatpush1.bf16.msra.mxu0 %v348
      %358 = vmatprep.subr.bf16.mxu0 0
      %359 = vmatpush1.bf16.msra.mxu0 %v334
      %360 = vmatprep.subr.bf16.mxu0 0
      %361 = vmatpush1.bf16.msra.mxu0 %v330
      %362 = vmatprep.subr.bf16.mxu0 0
      %363 = vmatpush1.bf16.msra.mxu0 %v326
      %364 = vmatprep.subr.bf16.mxu0 0
      %365 = vmatpush1.bf16.msra.mxu0 %v322
      %366 = vmatprep.subr.bf16.mxu0 0
      %367 = vmatpush2.bf16.msra.mxu0 0
      %368 = vmatprep.subr.bf16.mxu0 0
      %369 = vmatpush2.bf16.msra.mxu0 0
      %370 = vmatprep.subr.bf16.mxu0 0
      %371 = vmatpush2.bf16.msra.mxu0 0
      %372 = vmatprep.subr.bf16.mxu0 0
      %373 = vmatpush2.bf16.msra.mxu0 0
      %374 = vmatprep.subr.bf16.mxu0 0
      %375 = vmatpush2.bf16.msra.mxu0 0
      %376 = vmatprep.subr.bf16.mxu0 0
      %377 = vmatpush2.bf16.msra.mxu0 0
      %378 = vmatprep.subr.bf16.mxu0 0
      %379 = vmatpush2.bf16.msra.mxu0 0
      %380 = vmatprep.subr.bf16.mxu0 0
      %381 = vmatpush2.bf16.msra.mxu0 0
      %382 = vmatprep.mubr.bf16.mxu0 0
      %383 = vmatmul.mubr.bf16.gmra.mxu0 %v345
      %v384 = vpop.f32.mrf.mxu0
      %v385 = vadd.f32 %v341, %v384
      %v386 = vpop.f32.mrf.mxu0
      %v387 = vpop.f32.mrf.mxu0
      %v388 = vpop.f32.mrf.mxu0
      %389 = vdwg.mxu0
      %v390 = vmax.f32 %v385, 0.0
      %v391 = vld [vmem:[%s5] sm:$0x1]
      %v393 = vlaneseq
      %v394 = vshrl.u32 %v393, 7
      %v395 = vsub.s32 0, %v394
      %v396 = vrot.slane %v391, %v395
      %v398 = vmul.f32 %v390, %v396
      %v399 = vpack.c.bf16 %v398, %v398
      %v401 = vunpack.c.l.b16 %v399
      %v402 = vpack.c.b16 %v401, %v401
      %403 = vrot.lane.b32.xlu0 %v402, 11
      %v404 = vpop.permute.xlu0 %403
      %v405 = vrot.slane %v404, 4
      %vm406 = vcmask 89088
      %v407 = vsel %vm406, %v405, %v404
      %vm409 = vcmask 1043544
      %vm410 = vcmask 89092
      %vm411 = vmor %vm410, %vm409
      %412 = vst.msk [vmem:[#allocation2] sm:$0xff] %vm411, %v407
      %v413 = vld [vmem:[#allocation2] sm:$0xf]
      %v414 = vld [vmem:[#allocation2] sm:$0xff]
      %v416 = vunpack.c.l.b16 %v414
      %v417 = vunpack.c.h.b16 %v414
      %v418 = vpack.c.b16 %v416, %v416
      %v419 = vpack.c.b16 %v417, %v417
      %420 = vrot.lane.b32.xlu0 %v418, 127
      %v421 = vpop.permute.xlu0 %420
      %422 = vrot.lane.b32.xlu0 %v419, 127
      %v423 = vpop.permute.xlu0 %422
      %v424 = vsel %vm282, %v421, %v423
      %425 = vrot.lane.b32.xlu0 %v418, 126
      %v426 = vpop.permute.xlu0 %425
      %427 = vrot.lane.b32.xlu0 %v419, 126
      %v428 = vpop.permute.xlu0 %427
      %vm429 = vcmask 1031168
      %v430 = vsel %vm429, %v426, %v428
      %431 = vrot.lane.b32.xlu0 %v418, 118
      %v432 = vpop.permute.xlu0 %431
      %433 = vrot.lane.b32.xlu0 %v419, 118
      %v434 = vpop.permute.xlu0 %433
      %v435 = vsel %vm301, %v432, %v434
      %436 = vrot.lane.b32.xlu0 %v418, 117
      %v437 = vpop.permute.xlu0 %436
      %438 = vrot.lane.b32.xlu0 %v419, 117
      %v439 = vpop.permute.xlu0 %438
      %v440 = vsel %vm317, %v437, %v439
      %441 = vrot.lane.b32.xlu0 %v418, 116
      %v442 = vpop.permute.xlu0 %441
      %443 = vrot.lane.b32.xlu0 %v419, 116
      %v444 = vpop.permute.xlu0 %443
      %vm445 = vcmask 949248
      %v446 = vsel %vm445, %v442, %v444
      %447 = vrot.lane.b32.xlu0 %v418, 108
      %v448 = vpop.permute.xlu0 %447
      %449 = vrot.lane.b32.xlu0 %v419, 108
      %v450 = vpop.permute.xlu0 %449
      %vm451 = vcmask 883712
      %v452 = vsel %vm451, %v448, %v450
      %453 = vrot.lane.b32.xlu0 %v418, 107
      %v454 = vpop.permute.xlu0 %453
      %455 = vrot.lane.b32.xlu0 %v419, 107
      %v456 = vpop.permute.xlu0 %455
      %vm457 = vcmask 875520
      %v458 = vsel %vm457, %v454, %v456
      %459 = vrot.lane.b32.xlu0 %v418, 106
      %v460 = vpop.permute.xlu0 %459
      %461 = vrot.lane.b32.xlu0 %v419, 106
      %v462 = vpop.permute.xlu0 %461
      %vm463 = vcmask 867328
      %v464 = vsel %vm463, %v460, %v462
      %v467 = vsel %vm319, %v413, %v424
      %v471 = vsel %vm319, %v430, %v435
      %v475 = vsel %vm319, %v440, %v446
      %v479 = vsel %vm319, %v452, %v458
      %v481 = vld [vmem:[%s3] sm:$0xf]
      %v482 = vld [vmem:[%s4] sm:$0xff]
      %484 = vset.pattern.permute.xlu0 0
      %485 = vperm.xlu0 %484, %v482
      %v486 = vpop.permute.xlu0 %485
      %v489 = vsel %vm343, %v481, 0
      %v492 = vsel %vm319, %v464, 0
      %494 = vmatprep.subr.bf16.mxu0 0
      %495 = vmatpush1.bf16.msra.mxu0 0
      %496 = vmatprep.subr.bf16.mxu0 0
      %497 = vmatpush1.bf16.msra.mxu0 0
      %498 = vmatprep.subr.bf16.mxu0 0
      %499 = vmatpush1.bf16.msra.mxu0 0
      %500 = vmatprep.subr.bf16.mxu0 0
      %501 = vmatpush1.bf16.msra.mxu0 %v492
      %502 = vmatprep.subr.bf16.mxu0 0
      %503 = vmatpush1.bf16.msra.mxu0 %v479
      %504 = vmatprep.subr.bf16.mxu0 0
      %505 = vmatpush1.bf16.msra.mxu0 %v475
      %506 = vmatprep.subr.bf16.mxu0 0
      %507 = vmatpush1.bf16.msra.mxu0 %v471
      %508 = vmatprep.subr.bf16.mxu0 0
      %509 = vmatpush1.bf16.msra.mxu0 %v467
      %510 = vmatprep.subr.bf16.mxu0 0
      %511 = vmatpush2.bf16.msra.mxu0 0
      %512 = vmatprep.subr.bf16.mxu0 0
      %513 = vmatpush2.bf16.msra.mxu0 0
      %514 = vmatprep.subr.bf16.mxu0 0
      %515 = vmatpush2.bf16.msra.mxu0 0
      %516 = vmatprep.subr.bf16.mxu0 0
      %517 = vmatpush2.bf16.msra.mxu0 0
      %518 = vmatprep.subr.bf16.mxu0 0
      %519 = vmatpush2.bf16.msra.mxu0 0
      %520 = vmatprep.subr.bf16.mxu0 0
      %521 = vmatpush2.bf16.msra.mxu0 0
      %522 = vmatprep.subr.bf16.mxu0 0
      %523 = vmatpush2.bf16.msra.mxu0 0
      %524 = vmatprep.subr.bf16.mxu0 0
      %525 = vmatpush2.bf16.msra.mxu0 0
      %526 = vmatprep.mubr.bf16.mxu0 0
      %527 = vmatmul.mubr.bf16.gmra.mxu0 %v489
      %v528 = vpop.f32.mrf.mxu0
      %v529 = vadd.f32 %v486, %v528
      %v530 = vpop.f32.mrf.mxu0
      %v531 = vpop.f32.mrf.mxu0
      %v532 = vpop.f32.mrf.mxu0
      %533 = vdwg.mxu0
      %v534 = vmax.f32 %v529, 0.0
      %535 = vst [vmem:[%s256] sm:$0xff] %v534
      %s536 = scalar_lea.vmem %s250, 32
      %v537 = vld [vmem:[%s536] sm:$0xf]
      %s538 = scalar_lea.vmem %s250, 40
      %v539 = vld [vmem:[%s538] sm:$0xf]
      %v540 = vld [vmem:[%s536] sm:$0xff]
      %s541 = scalar_lea.vmem %s250, 48
      %v542 = vld [vmem:[%s541] sm:$0xf]
      %s543 = scalar_lea.vmem %s250, 56
      %v544 = vld [vmem:[%s543] sm:$0xf]
      %v545 = vld [vmem:[%s541] sm:$0xff]
      %v546 = vld [vmem:[%s538] sm:$0xff]
      %v548 = vunpack.c.l.b16 %v539
      %v549 = vpack.c.b16 %v548, %v548
      %v551 = vunpack.c.l.b16 %v540
      %v552 = vunpack.c.h.b16 %v540
      %v553 = vpack.c.b16 %v551, %v551
      %v554 = vpack.c.b16 %v552, %v552
      %555 = vrot.lane.b32.xlu0 %v553, 127
      %v556 = vpop.permute.xlu0 %555
      %557 = vrot.lane.b32.xlu0 %v554, 127
      %v558 = vpop.permute.xlu0 %557
      %v559 = vsel %vm282, %v556, %v558
      %v561 = vunpack.c.l.b16 %v542
      %v562 = vpack.c.b16 %v561, %v561
      %v564 = vunpack.c.l.b16 %v545
      %v565 = vunpack.c.h.b16 %v545
      %v566 = vpack.c.b16 %v564, %v564
      %v567 = vpack.c.b16 %v565, %v565
      %568 = vrot.lane.b32.xlu0 %v566, 127
      %v569 = vpop.permute.xlu0 %568
      %570 = vrot.lane.b32.xlu0 %v567, 127
      %v571 = vpop.permute.xlu0 %570
      %v572 = vsel %vm282, %v569, %v571
      %573 = vrot.lane.b32.xlu0 %v553, 118
      %v574 = vpop.permute.xlu0 %573
      %575 = vrot.lane.b32.xlu0 %v554, 118
      %v576 = vpop.permute.xlu0 %575
      %v577 = vsel %vm301, %v574, %v576
      %v579 = vunpack.c.l.b16 %v546
      %v580 = vunpack.c.h.b16 %v546
      %v581 = vpack.c.b16 %v579, %v579
      %v582 = vpack.c.b16 %v580, %v580
      %583 = vrot.lane.b32.xlu0 %v581, 118
      %v584 = vpop.permute.xlu0 %583
      %585 = vrot.lane.b32.xlu0 %v582, 118
      %v586 = vpop.permute.xlu0 %585
      %v587 = vsel %vm301, %v584, %v586
      %588 = vrot.lane.b32.xlu0 %v553, 117
      %v589 = vpop.permute.xlu0 %588
      %590 = vrot.lane.b32.xlu0 %v554, 117
      %v591 = vpop.permute.xlu0 %590
      %v592 = vsel %vm317, %v589, %v591
      %v595 = vsel %vm319, %v537, %v549
      %v599 = vsel %vm319, %v559, %v562
      %v603 = vsel %vm319, %v544, %v572
      %v607 = vsel %vm319, %v577, %v587
      %v609 = vld [vmem:[%s1] sm:$0xf]
      %v610 = vld [vmem:[%s2] sm:$0xff]
      %612 = vset.pattern.permute.xlu0 0
      %613 = vperm.xlu0 %612, %v610
      %v614 = vpop.permute.xlu0 %613
      %v617 = vsel %vm343, %v609, 0
      %v620 = vsel %vm319, %v592, 0
      %622 = vmatprep.subr.bf16.mxu0 0
      %623 = vmatpush1.bf16.msra.mxu0 0
      %624 = vmatprep.subr.bf16.mxu0 0
      %625 = vmatpush1.bf16.msra.mxu0 0
      %626 = vmatprep.subr.bf16.mxu0 0
      %627 = vmatpush1.bf16.msra.mxu0 0
      %628 = vmatprep.subr.bf16.mxu0 0
      %629 = vmatpush1.bf16.msra.mxu0 %v620
      %630 = vmatprep.subr.bf16.mxu0 0
      %631 = vmatpush1.bf16.msra.mxu0 %v607
      %632 = vmatprep.subr.bf16.mxu0 0
      %633 = vmatpush1.bf16.msra.mxu0 %v603
      %634 = vmatprep.subr.bf16.mxu0 0
      %635 = vmatpush1.bf16.msra.mxu0 %v599
      %636 = vmatprep.subr.bf16.mxu0 0
      %637 = vmatpush1.bf16.msra.mxu0 %v595
      %638 = vmatprep.subr.bf16.mxu0 0
      %639 = vmatpush2.bf16.msra.mxu0 0
      %640 = vmatprep.subr.bf16.mxu0 0
      %641 = vmatpush2.bf16.msra.mxu0 0
      %642 = vmatprep.subr.bf16.mxu0 0
      %643 = vmatpush2.bf16.msra.mxu0 0
      %644 = vmatprep.subr.bf16.mxu0 0
      %645 = vmatpush2.bf16.msra.mxu0 0
      %646 = vmatprep.subr.bf16.mxu0 0
      %647 = vmatpush2.bf16.msra.mxu0 0
      %648 = vmatprep.subr.bf16.mxu0 0
      %649 = vmatpush2.bf16.msra.mxu0 0
      %650 = vmatprep.subr.bf16.mxu0 0
      %651 = vmatpush2.bf16.msra.mxu0 0
      %652 = vmatprep.subr.bf16.mxu0 0
      %653 = vmatpush2.bf16.msra.mxu0 0
      %654 = vmatprep.mubr.bf16.mxu0 0
      %655 = vmatmul.mubr.bf16.gmra.mxu0 %v617
      %v656 = vpop.f32.mrf.mxu0
      %v657 = vadd.f32 %v614, %v656
      %v658 = vpop.f32.mrf.mxu0
      %v659 = vpop.f32.mrf.mxu0
      %v660 = vpop.f32.mrf.mxu0
      %661 = vdwg.mxu0
      %v662 = vmax.f32 %v657, 0.0
      %v663 = vld [vmem:[%s5] sm:$0x1]
      %v665 = vlaneseq
      %v666 = vshrl.u32 %v665, 7
      %v667 = vsub.s32 0, %v666
      %v668 = vrot.slane %v663, %v667
      %v670 = vmul.f32 %v662, %v668
      %v671 = vpack.c.bf16 %v670, %v670
      %v673 = vunpack.c.l.b16 %v671
      %v674 = vpack.c.b16 %v673, %v673
      %675 = vrot.lane.b32.xlu0 %v674, 11
      %v676 = vpop.permute.xlu0 %675
      %v677 = vrot.slane %v676, 4
      %v678 = vsel %vm406, %v677, %v676
      %680 = vst.msk [vmem:[#allocation2] sm:$0xff] %vm411, %v678
      %v681 = vld [vmem:[#allocation2] sm:$0xf]
      %v682 = vld [vmem:[#allocation2] sm:$0xff]
      %v684 = vunpack.c.l.b16 %v682
      %v685 = vunpack.c.h.b16 %v682
      %v686 = vpack.c.b16 %v684, %v684
      %v687 = vpack.c.b16 %v685, %v685
      %688 = vrot.lane.b32.xlu0 %v686, 127
      %v689 = vpop.permute.xlu0 %688
      %690 = vrot.lane.b32.xlu0 %v687, 127
      %v691 = vpop.permute.xlu0 %690
      %v692 = vsel %vm282, %v689, %v691
      %693 = vrot.lane.b32.xlu0 %v686, 126
      %v694 = vpop.permute.xlu0 %693
      %695 = vrot.lane.b32.xlu0 %v687, 126
      %v696 = vpop.permute.xlu0 %695
      %v697 = vsel %vm429, %v694, %v696
      %698 = vrot.lane.b32.xlu0 %v686, 118
      %v699 = vpop.permute.xlu0 %698
      %700 = vrot.lane.b32.xlu0 %v687, 118
      %v701 = vpop.permute.xlu0 %700
      %v702 = vsel %vm301, %v699, %v701
      %703 = vrot.lane.b32.xlu0 %v686, 117
      %v704 = vpop.permute.xlu0 %703
      %705 = vrot.lane.b32.xlu0 %v687, 117
      %v706 = vpop.permute.xlu0 %705
      %v707 = vsel %vm317, %v704, %v706
      %708 = vrot.lane.b32.xlu0 %v686, 116
      %v709 = vpop.permute.xlu0 %708
      %710 = vrot.lane.b32.xlu0 %v687, 116
      %v711 = vpop.permute.xlu0 %710
      %v712 = vsel %vm445, %v709, %v711
      %713 = vrot.lane.b32.xlu0 %v686, 108
      %v714 = vpop.permute.xlu0 %713
      %715 = vrot.lane.b32.xlu0 %v687, 108
      %v716 = vpop.permute.xlu0 %715
      %v717 = vsel %vm451, %v714, %v716
      %718 = vrot.lane.b32.xlu0 %v686, 107
      %v719 = vpop.permute.xlu0 %718
      %720 = vrot.lane.b32.xlu0 %v687, 107
      %v721 = vpop.permute.xlu0 %720
      %v722 = vsel %vm457, %v719, %v721
      %723 = vrot.lane.b32.xlu0 %v686, 106
      %v724 = vpop.permute.xlu0 %723
      %725 = vrot.lane.b32.xlu0 %v687, 106
      %v726 = vpop.permute.xlu0 %725
      %v727 = vsel %vm463, %v724, %v726
      %v730 = vsel %vm319, %v681, %v692
      %v734 = vsel %vm319, %v697, %v702
      %v738 = vsel %vm319, %v707, %v712
      %v742 = vsel %vm319, %v717, %v722
      %v744 = vld [vmem:[%s3] sm:$0xf]
      %v745 = vld [vmem:[%s4] sm:$0xff]
      %747 = vset.pattern.permute.xlu0 0
      %748 = vperm.xlu0 %747, %v745
      %v749 = vpop.permute.xlu0 %748
      %v752 = vsel %vm343, %v744, 0
      %v755 = vsel %vm319, %v727, 0
      %757 = vmatprep.subr.bf16.mxu0 0
      %758 = vmatpush1.bf16.msra.mxu0 0
      %759 = vmatprep.subr.bf16.mxu0 0
      %760 = vmatpush1.bf16.msra.mxu0 0
      %761 = vmatprep.subr.bf16.mxu0 0
      %762 = vmatpush1.bf16.msra.mxu0 0
      %763 = vmatprep.subr.bf16.mxu0 0
      %764 = vmatpush1.bf16.msra.mxu0 %v755
      %765 = vmatprep.subr.bf16.mxu0 0
      %766 = vmatpush1.bf16.msra.mxu0 %v742
      %767 = vmatprep.subr.bf16.mxu0 0
      %768 = vmatpush1.bf16.msra.mxu0 %v738
      %769 = vmatprep.subr.bf16.mxu0 0
      %770 = vmatpush1.bf16.msra.mxu0 %v734
      %771 = vmatprep.subr.bf16.mxu0 0
      %772 = vmatpush1.bf16.msra.mxu0 %v730
      %773 = vmatprep.subr.bf16.mxu0 0
      %774 = vmatpush2.bf16.msra.mxu0 0
      %775 = vmatprep.subr.bf16.mxu0 0
      %776 = vmatpush2.bf16.msra.mxu0 0
      %777 = vmatprep.subr.bf16.mxu0 0
      %778 = vmatpush2.bf16.msra.mxu0 0
      %779 = vmatprep.subr.bf16.mxu0 0
      %780 = vmatpush2.bf16.msra.mxu0 0
      %781 = vmatprep.subr.bf16.mxu0 0
      %782 = vmatpush2.bf16.msra.mxu0 0
      %783 = vmatprep.subr.bf16.mxu0 0
      %784 = vmatpush2.bf16.msra.mxu0 0
      %785 = vmatprep.subr.bf16.mxu0 0
      %786 = vmatpush2.bf16.msra.mxu0 0
      %787 = vmatprep.subr.bf16.mxu0 0
      %788 = vmatpush2.bf16.msra.mxu0 0
      %789 = vmatprep.mubr.bf16.mxu0 0
      %790 = vmatmul.mubr.bf16.gmra.mxu0 %v752
      %v791 = vpop.f32.mrf.mxu0
      %v792 = vadd.f32 %v749, %v791
      %v793 = vpop.f32.mrf.mxu0
      %v794 = vpop.f32.mrf.mxu0
      %v795 = vpop.f32.mrf.mxu0
      %796 = vdwg.mxu0
      %v797 = vmax.f32 %v792, 0.0
      %s798 = scalar_lea.vmem %s256, 8
      %799 = vst [vmem:[%s798] sm:$0xff] %v797
      %s800 = smul.u32 2, %s17
      %p801 = scmp.lt.s32.totalorder %s800, 3
      %s802 = scalar_select %p801, %s800, 3
      %s803 = smul.addr %s802, 8
      %s804 = scalar_lea.vmem %s6, %s803
      // Predicated region
      $region45: #{bottleneck33_forward.1} parent=43 // pred_check
        %p805 = pneg %p166
      $region46: #{bottleneck33_forward.1} parent=43 // pred_check_branch
        %807 = sbr.rel (%p805) target = $region48
      $region47: #{bottleneck33_forward.1} parent=43 // pred_region
        %s808 = smul.u32 2, %s17
      $region48: #{bottleneck33_forward.1} parent=43 // pred_fallthru
        _
    $region44: #{bottleneck33_forward.1} parent=5 // pred_fallthru
      _
    %p809 = scmp.le.s32.totalorder 2, %s12
    // Predicated region
    $region49: #{bottleneck33_forward.1} parent=5 // pred_check
      %p810 = pneg %p809
    $region50: #{bottleneck33_forward.1} parent=5 // pred_check_branch
      %812 = sbr.rel (%p810) target = $region52
    $region51: #{bottleneck33_forward.1} parent=5 // pred_region
      %s813 = ssub.s32 %s12, 2
      // Predicated region
      $region53: #{bottleneck33_forward.1} parent=51 // pred_check
        %p814 = pneg %p172
      $region54: #{bottleneck33_forward.1} parent=51 // pred_check_branch
        %816 = sbr.rel (%p814) target = $region56
      $region55: #{bottleneck33_forward.1} parent=51 // pred_region
        %s817 = smul.u32 2, %s18
        %p818 = scmp.lt.s32.totalorder %s817, 3
        %s819 = scalar_select %p818, %s817, 3
        %s820 = smul.addr %s819, 8
        %s821 = scalar_lea.vmem %s6, %s820
      $region56: #{bottleneck33_forward.1} parent=51 // pred_fallthru
        _
    $region52: #{bottleneck33_forward.1} parent=5 // pred_fallthru
      _
  $region6: #{bottleneck33_forward.1} parent=0 // loop_footer
    %s16 = sadd.s32 1, %s12
  $region7: #{bottleneck33_forward.1} parent=0 // loop_footer_branch
    %11 = sbr.rel target = $region3
  $region8: #{bottleneck33_forward.1} parent=0 // loop_exit
    _

</llo_original>
